<compile_context>
chip_gen: v7x
topology: tpu7x:2x2x1
jax: 0.10.0
libtpu: 0.0.40
codegen_flags: <defaults>
</compile_context>

<pallas_src>
import functools

import jax
import jax.numpy as jnp
from jax.experimental import pallas as pl
from jax.experimental.pallas import tpu as pltpu

_LANE = 128


def _round_up(x, m):
    return (x + m - 1) // m * m


def _sublane(dtype):
    # Native sublane granularity per dtype width (f32: 8, bf16: 16, int8: 32).
    return 8 * (4 // jnp.dtype(dtype).itemsize)


def _fused_mlp_kernel(x_ref, *refs, num_layers):
    """Fused MLP on one (TM, K) row tile.

    refs = (w0, b0, w1, b1, ..., w_{L-1}, b_{L-1}, o_ref). Weights/biases are
    VMEM-resident across the whole grid; only x/out row tiles stream from HBM.
    """
    o_ref = refs[-1]
    params = refs[:-1]

    h = x_ref[...]  # (TM, K), compute dtype
    for i in range(num_layers):
        w_ref = params[2 * i]
        b_ref = params[2 * i + 1]
        # MXU matmul with f32 accumulation.
        y = jnp.dot(h, w_ref[...], preferred_element_type=jnp.float32)
        # Bias add (+ ReLU) epilogue kept in f32 (VPU-friendly on v5e too).
        y = y + b_ref[...]  # (1, N) broadcasts over rows
        if i != num_layers - 1:
            y = jnp.maximum(y, 0.0)
            # TODO(synk): dropout omitted (inference / eval-mode identity).
            h = y.astype(w_ref.dtype)  # feed next MXU matmul in compute dtype
        else:
            h = y
    o_ref[...] = h.astype(o_ref.dtype)


def prepare_params(params, *, compute_dtype=jnp.float32):
    """One-time (init-time) cast/reshape of weights & biases for the kernel.

    Weights -> compute_dtype (f32 or bf16); biases stay f32 (epilogue math).
    """
    prepped = []
    for w, b in params:
        prepped.append(
            (jnp.asarray(w, compute_dtype), jnp.asarray(b, jnp.float32).reshape(1, -1))
        )
    return prepped


def fused_mlp(x2d, prepped_params, *, out_dtype=None, tm=4096):
    """x2d: (M, K); prepped_params: list of (w: (din, dout), b: (1, dout)).

    Returns (M, output_dim) in out_dtype. All layers fused into one kernel;
    no padding of the streamed tensors, no wrapper-side copies.
    """
    M, K = x2d.shape
    num_layers = len(prepped_params)
    out_dim = prepped_params[-1][0].shape[1]
    out_dtype = x2d.dtype if out_dtype is None else out_dtype

    # Row tile: dtype-aware sublane multiple, capped at `tm`, and sized so the
    # grid has >= 2 steps when M allows (keeps both v7x TensorCores busy).
    sub = _sublane(x2d.dtype)
    if M <= sub:
        TM = M  # block equals the full row extent
    else:
        TM = min(tm, _round_up(pl.cdiv(M, 2), sub))
    grid = (pl.cdiv(M, TM),)

    kernel_args = [x2d]
    in_specs = [pl.BlockSpec((TM, K), lambda i: (i, 0))]
    for w, b in prepped_params:
        kernel_args.append(w)
        kernel_args.append(b)
        in_specs.append(pl.BlockSpec(w.shape, lambda i: (0, 0)))
        in_specs.append(pl.BlockSpec(b.shape, lambda i: (0, 0)))

    # Advisory cost estimate (unpadded dims) for XLA's scheduler.
    dims = [K] + [w.shape[1] for w, _ in prepped_params]
    flops = sum(2 * M * dims[i] * dims[i + 1] for i in range(num_layers))
    bytes_accessed = (
        M * K * x2d.dtype.itemsize
        + M * out_dim * jnp.dtype(out_dtype).itemsize
        + sum(int(a.size) * a.dtype.itemsize for a in kernel_args[1:])
    )

    return pl.pallas_call(
        functools.partial(_fused_mlp_kernel, num_layers=num_layers),
        out_shape=jax.ShapeDtypeStruct((M, out_dim), out_dtype),
        grid=grid,
        in_specs=in_specs,
        out_specs=pl.BlockSpec((TM, out_dim), lambda i: (i, 0)),
        compiler_params=pltpu.CompilerParams(
            dimension_semantics=("parallel",),   # row tiles shard across TCs (v7x)
            vmem_limit_bytes=32 * 1024 * 1024,   # safe on all gens; tiles are tiny
        ),
        cost_estimate=pl.CostEstimate(
            flops=flops, transcendentals=0, bytes_accessed=bytes_accessed
        ),
    )(*kernel_args)


def init_mlp_params(key, input_dim, hidden_dim, num_layers, output_dim):
    """Deterministic init matching the PyTorch module's layer shapes.

    Hidden layers: (num_layers - 1) x Linear(in, hidden) [+ ReLU + Dropout]
    Final layer:   Linear(hidden, output)
    Weights stored as (in_features, out_features) (i.e. PyTorch weight.T).
    """
    dims_in = [input_dim] + [hidden_dim] * (num_layers - 1)
    dims_out = [hidden_dim] * (num_layers - 1) + [output_dim]
    params = []
    for din, dout in zip(dims_in, dims_out):
        key, kw, kb = jax.random.split(key, 3)
        bound = 1.0 / jnp.sqrt(jnp.float32(din))
        w = jax.random.uniform(kw, (din, dout), jnp.float32, -bound, bound)
        b = jax.random.uniform(kb, (dout,), jnp.float32, -bound, bound)
        params.append((w, b))
    return params


def mlp_forward(x, prepped_params, *, tm=4096):
    """x: (..., input_dim) -> (..., output_dim). Inference mode (dropout = id)."""
    lead_shape = x.shape[:-1]
    out_dim = prepped_params[-1][0].shape[1]
    xf = x.reshape(-1, x.shape[-1])
    compute_dtype = prepped_params[0][0].dtype
    if xf.dtype != compute_dtype:
        # bf16 streaming path: halves streamed input bytes (helps most on v5e).
        xf = xf.astype(compute_dtype)
    yf = fused_mlp(xf, prepped_params, out_dtype=x.dtype, tm=tm)
    return yf.reshape(*lead_shape, out_dim)


if __name__ == "__main__":
    # Small config consistent with the module: MLP(input_dim=4, hidden_dim=32,
    # num_layers=3, output_dim=2), applied to a (batch=2, seq=8, 4) tensor.
    input_dim, hidden_dim, num_layers, output_dim = 4, 32, 3, 2
    B, N = 2, 8

    key = jax.random.PRNGKey(0)
    key, kx = jax.random.split(key)
    x = jax.random.normal(kx, (B, N, input_dim), jnp.float32)

    params = init_mlp_params(key, input_dim, hidden_dim, num_layers, output_dim)

    # f32 streaming/compute path (exact vs. reference).
    p_f32 = prepare_params(params, compute_dtype=jnp.float32)
    out = jax.block_until_ready(mlp_forward(x, p_f32))
    assert out.shape == (B, N, output_dim), out.shape

    # Pure-JAX reference (same math, no Pallas).
    ref = x.reshape(-1, input_dim)
    for i, (w, b) in enumerate(params):
        ref = ref @ w + b.reshape(1, -1)
        if i != len(params) - 1:
            ref = jnp.maximum(ref, 0.0)
    ref = ref.reshape(B, N, output_dim)
    assert jnp.allclose(out, ref, atol=1e-5, rtol=1e-5)

    # bf16 streaming path (halved HBM traffic; f32 accumulation), looser tolerance.
    p_bf16 = prepare_params(params, compute_dtype=jnp.bfloat16)
    out_bf16 = jax.block_until_ready(mlp_forward(x, p_bf16))
    assert jnp.allclose(out_bf16, ref, atol=1e-1, rtol=1e-1)

    print("KERNEL_OK")
</pallas_src>

<mosaic_0001>
module attributes {stable_mosaic.version = 11 : i64} {
  func.func @_fused_mlp_kernel(%arg0: i32, %arg1: memref<8x4xf32, #tpu.memory_space<vmem>>, %arg2: memref<4x32xf32, #tpu.memory_space<vmem>>, %arg3: memref<1x32xf32, #tpu.memory_space<vmem>>, %arg4: memref<32x32xf32, #tpu.memory_space<vmem>>, %arg5: memref<1x32xf32, #tpu.memory_space<vmem>>, %arg6: memref<32x2xf32, #tpu.memory_space<vmem>>, %arg7: memref<1x2xf32, #tpu.memory_space<vmem>>, %arg8: memref<8x2xf32, #tpu.memory_space<vmem>>) attributes {dimension_semantics = [#tpu.dimension_semantics<parallel>], iteration_bounds = array<i64: 2>, scalar_prefetch = 0 : i64, scratch_operands = 0 : i64, tpu.core_type = #tpu.core_type<tc>, window_params = [{transform_indices = @transform_0, window_bounds = array<i64: 8, 4>}, {pipeline_mode = #tpu.pipeline_mode<synchronous>, transform_indices = @transform_1, window_bounds = array<i64: 4, 32>}, {pipeline_mode = #tpu.pipeline_mode<synchronous>, transform_indices = @transform_2, window_bounds = array<i64: 1, 32>}, {pipeline_mode = #tpu.pipeline_mode<synchronous>, transform_indices = @transform_3, window_bounds = array<i64: 32, 32>}, {pipeline_mode = #tpu.pipeline_mode<synchronous>, transform_indices = @transform_4, window_bounds = array<i64: 1, 32>}, {pipeline_mode = #tpu.pipeline_mode<synchronous>, transform_indices = @transform_5, window_bounds = array<i64: 32, 2>}, {pipeline_mode = #tpu.pipeline_mode<synchronous>, transform_indices = @transform_6, window_bounds = array<i64: 1, 2>}, {transform_indices = @transform_7, window_bounds = array<i64: 8, 2>}]} {
    %c0 = arith.constant 0 : index
    %c0_0 = arith.constant 0 : index
    %0 = vector.load %arg1[%c0, %c0_0] : memref<8x4xf32, #tpu.memory_space<vmem>>, vector<8x4xf32>
    %c0_1 = arith.constant 0 : index
    %c0_2 = arith.constant 0 : index
    %1 = vector.load %arg2[%c0_1, %c0_2] : memref<4x32xf32, #tpu.memory_space<vmem>>, vector<4x32xf32>
    %cst = arith.constant dense<0.000000e+00> : vector<8x32xf32>
    %2 = tpu.matmul %0, %1, %cst {dimension_numbers = #tpu.dot_dimension_numbers<[1], [0], [0], [1], [0, 0, 1, 1], [], []>} : vector<8x4xf32>, vector<4x32xf32>, vector<8x32xf32> -> vector<8x32xf32>
    %c0_3 = arith.constant 0 : index
    %c0_4 = arith.constant 0 : index
    %3 = vector.load %arg3[%c0_3, %c0_4] : memref<1x32xf32, #tpu.memory_space<vmem>>, vector<1x32xf32>
    %4 = vector.broadcast %3 : vector<1x32xf32> to vector<8x32xf32>
    %5 = arith.addf %2, %4 : vector<8x32xf32>
    %cst_5 = arith.constant 0.000000e+00 : f32
    %6 = vector.broadcast %cst_5 : f32 to vector<8x32xf32>
    %7 = arith.maximumf %5, %6 : vector<8x32xf32>
    %c0_6 = arith.constant 0 : index
    %c0_7 = arith.constant 0 : index
    %8 = vector.load %arg4[%c0_6, %c0_7] : memref<32x32xf32, #tpu.memory_space<vmem>>, vector<32x32xf32>
    %cst_8 = arith.constant dense<0.000000e+00> : vector<8x32xf32>
    %9 = tpu.matmul %7, %8, %cst_8 {dimension_numbers = #tpu.dot_dimension_numbers<[1], [0], [0], [1], [0, 0, 1, 1], [], []>} : vector<8x32xf32>, vector<32x32xf32>, vector<8x32xf32> -> vector<8x32xf32>
    %c0_9 = arith.constant 0 : index
    %c0_10 = arith.constant 0 : index
    %10 = vector.load %arg5[%c0_9, %c0_10] : memref<1x32xf32, #tpu.memory_space<vmem>>, vector<1x32xf32>
    %11 = vector.broadcast %10 : vector<1x32xf32> to vector<8x32xf32>
    %12 = arith.addf %9, %11 : vector<8x32xf32>
    %cst_11 = arith.constant 0.000000e+00 : f32
    %13 = vector.broadcast %cst_11 : f32 to vector<8x32xf32>
    %14 = arith.maximumf %12, %13 : vector<8x32xf32>
    %c0_12 = arith.constant 0 : index
    %c0_13 = arith.constant 0 : index
    %15 = vector.load %arg6[%c0_12, %c0_13] : memref<32x2xf32, #tpu.memory_space<vmem>>, vector<32x2xf32>
    %cst_14 = arith.constant dense<0.000000e+00> : vector<8x2xf32>
    %16 = tpu.matmul %14, %15, %cst_14 {dimension_numbers = #tpu.dot_dimension_numbers<[1], [0], [0], [1], [0, 0, 1, 1], [], []>} : vector<8x32xf32>, vector<32x2xf32>, vector<8x2xf32> -> vector<8x2xf32>
    %c0_15 = arith.constant 0 : index
    %c0_16 = arith.constant 0 : index
    %17 = vector.load %arg7[%c0_15, %c0_16] : memref<1x2xf32, #tpu.memory_space<vmem>>, vector<1x2xf32>
    %18 = vector.broadcast %17 : vector<1x2xf32> to vector<8x2xf32>
    %19 = arith.addf %16, %18 : vector<8x2xf32>
    %c0_17 = arith.constant 0 : index
    %c0_18 = arith.constant 0 : index
    %20 = vector.load %arg8[%c0_17, %c0_18] : memref<8x2xf32, #tpu.memory_space<vmem>>, vector<8x2xf32>
    tpu.vector_store %arg8[%c0_17, %c0_18], %19 {strides = array<i32>} : memref<8x2xf32, #tpu.memory_space<vmem>>, vector<8x2xf32>,
    return
  }
  func.func @transform_0(%arg0: i32) -> (i32, i32) {
    %c0_i32 = arith.constant 0 : i32
    %c0_i32_0 = arith.constant 0 : i32
    return %arg0, %c0_i32 : i32, i32
  }
  func.func @transform_1(%arg0: i32) -> (i32, i32) {
    %c0_i32 = arith.constant 0 : i32
    %c0_i32_0 = arith.constant 0 : i32
    %c0_i32_1 = arith.constant 0 : i32
    return %c0_i32, %c0_i32_0 : i32, i32
  }
  func.func @transform_2(%arg0: i32) -> (i32, i32) {
    %c0_i32 = arith.constant 0 : i32
    %c0_i32_0 = arith.constant 0 : i32
    %c0_i32_1 = arith.constant 0 : i32
    return %c0_i32, %c0_i32_0 : i32, i32
  }
  func.func @transform_3(%arg0: i32) -> (i32, i32) {
    %c0_i32 = arith.constant 0 : i32
    %c0_i32_0 = arith.constant 0 : i32
    %c0_i32_1 = arith.constant 0 : i32
    return %c0_i32, %c0_i32_0 : i32, i32
  }
  func.func @transform_4(%arg0: i32) -> (i32, i32) {
    %c0_i32 = arith.constant 0 : i32
    %c0_i32_0 = arith.constant 0 : i32
    %c0_i32_1 = arith.constant 0 : i32
    return %c0_i32, %c0_i32_0 : i32, i32
  }
  func.func @transform_5(%arg0: i32) -> (i32, i32) {
    %c0_i32 = arith.constant 0 : i32
    %c0_i32_0 = arith.constant 0 : i32
    %c0_i32_1 = arith.constant 0 : i32
    return %c0_i32, %c0_i32_0 : i32, i32
  }
  func.func @transform_6(%arg0: i32) -> (i32, i32) {
    %c0_i32 = arith.constant 0 : i32
    %c0_i32_0 = arith.constant 0 : i32
    %c0_i32_1 = arith.constant 0 : i32
    return %c0_i32, %c0_i32_0 : i32, i32
  }
  func.func @transform_7(%arg0: i32) -> (i32, i32) {
    %c0_i32 = arith.constant 0 : i32
    %c0_i32_0 = arith.constant 0 : i32
    return %arg0, %c0_i32 : i32, i32
  }
}

</mosaic_0001>

<llo_original>
// kernel: tpu_custom_call.1
$region0: #{tpu_custom_call.1}
  #allocation0 [shape = 'u32[]', space=smem, size = 0x4, offset = 0x4, fixed_abs, tag = 'smem constant byte address 0x4 - core index']
  #allocation1 [shape = 'u32[144,128]{1,0:T(1,128)}', space=vmem, size = 0x12000, scoped, tag = 'internal scratch']
  %s0 = inlined_call_operand.vmem [shape: f32[16,4], index: 0, kind: input, shape index: {}]
  %s1 = inlined_call_operand.vmem [shape: f32[4,32], index: 1, kind: input, shape index: {}]
  %s2 = inlined_call_operand.vmem [shape: f32[1,32], index: 2, kind: input, shape index: {}]
  %s3 = inlined_call_operand.vmem [shape: f32[32,32], index: 3, kind: input, shape index: {}]
  %s4 = inlined_call_operand.vmem [shape: f32[1,32], index: 4, kind: input, shape index: {}]
  %s5 = inlined_call_operand.vmem [shape: f32[32,2], index: 5, kind: input, shape index: {}]
  %s6 = inlined_call_operand.vmem [shape: f32[1,2], index: 6, kind: input, shape index: {}]
  %s7 = inlined_call_operand.vmem [shape: f32[16,2], index: 7, kind: output, shape index: {}]
  %s8 = sld [smem:[#allocation0]]
  $region61: #{tpu_custom_call.1} parent=0
    _
  %s10 = ssub.s32 1, %s8
  %s11 = scalar_select 0, %s10, %s8
  loop: start=0, step=1, limit=4
  $region2: #{tpu_custom_call.1} parent=0 // loop_pre_header
    _
  $region3: #{tpu_custom_call.1} parent=0 // loop_header
    %s13 = sphi 0, %s17
    %p14 = scmp.ge.s32.totalorder %s13, 4
    %s23 = sphi 0, %s25
    %s26 = sphi 0, %s23
    %s27 = sphi 0, %s26
    %s43 = sphi 0, %s27
    %s47 = sphi 0, %s47
    %s49 = sphi 0, %s47
    %s50 = sphi 0, %s49
    %s64 = sphi 0, %s50
    %s68 = sphi 0, %s68
    %s70 = sphi 0, %s68
    %s71 = sphi 0, %s70
    %s85 = sphi 0, %s71
    %s89 = sphi 0, %s89
    %s91 = sphi 0, %s89
    %s92 = sphi 0, %s91
    %s106 = sphi 0, %s92
    %s110 = sphi 0, %s110
    %s112 = sphi 0, %s110
    %s113 = sphi 0, %s112
    %s127 = sphi 0, %s113
    %s131 = sphi 0, %s131
    %s133 = sphi 0, %s131
    %s134 = sphi 0, %s133
    %s148 = sphi 0, %s134
    %s152 = sphi 0, %s152
    %s154 = sphi 0, %s152
    %s155 = sphi 0, %s154
    %s169 = sphi 0, %s155
    %s175 = sphi 0, %s177
    %s178 = sphi 0, %s175
    %s179 = sphi 0, %s178
    %s195 = sphi 0, %s179
  $region4: #{tpu_custom_call.1} parent=0 // loop_header_branch
    %16 = sbr.rel (%p14) target = $region8
  $region5: #{tpu_custom_call.1} parent=0 // loop_body
    %s18 = ssub.s32 %s13, 1
    %s19 = ssub.s32 %s13, 2
    %s20 = sadd.s32 %s13, 1
    %s21 = ssub.s32 %s13, %s20
    %p22 = scmp.eq.s32.totalorder %s21, 0
    %s24 = sadd.s32 %s23, 1
    %s25 = scalar_select %p22, %s23, %s24
    %p28 = pneg %p22
    %p29 = scmp.eq.s32.totalorder %s13, 1
    %p30 = por %p28, %p29
    %p31 = scmp.ne.s32.totalorder %s23, %s26
    %p32 = scmp.eq.s32.totalorder %s13, 0
    %p33 = por %p31, %p32
    %p34 = scmp.ne.s32.totalorder %s23, %s26
    %p35 = scmp.eq.s32.totalorder %s18, 1
    %p36 = por %p34, %p35
    %p37 = scmp.ne.s32.totalorder %s26, %s27
    %p38 = scmp.eq.s32.totalorder %s18, 0
    %p39 = por %p37, %p38
    %p40 = scmp.ne.s32.totalorder %s26, %s27
    %p41 = scmp.eq.s32.totalorder %s19, 1
    %p42 = por %p40, %p41
    %p44 = scmp.ne.s32.totalorder %s27, %s43
    %p45 = scmp.eq.s32.totalorder %s19, 0
    %p46 = por %p44, %p45
    %s48 = sadd.s32 %s47, 1
    %p51 = scmp.eq.s32.totalorder %s13, 1
    %p52 = scmp.ne.s32.totalorder %s47, %s49
    %p53 = scmp.eq.s32.totalorder %s13, 0
    %p54 = por %p52, %p53
    %p55 = scmp.ne.s32.totalorder %s47, %s49
    %p56 = scmp.eq.s32.totalorder %s18, 1
    %p57 = por %p55, %p56
    %p58 = scmp.ne.s32.totalorder %s49, %s50
    %p59 = scmp.eq.s32.totalorder %s18, 0
    %p60 = por %p58, %p59
    %p61 = scmp.ne.s32.totalorder %s49, %s50
    %p62 = scmp.eq.s32.totalorder %s19, 1
    %p63 = por %p61, %p62
    %p65 = scmp.ne.s32.totalorder %s50, %s64
    %p66 = scmp.eq.s32.totalorder %s19, 0
    %p67 = por %p65, %p66
    %s69 = sadd.s32 %s68, 1
    %p72 = scmp.eq.s32.totalorder %s13, 1
    %p73 = scmp.ne.s32.totalorder %s68, %s70
    %p74 = scmp.eq.s32.totalorder %s13, 0
    %p75 = por %p73, %p74
    %p76 = scmp.ne.s32.totalorder %s68, %s70
    %p77 = scmp.eq.s32.totalorder %s18, 1
    %p78 = por %p76, %p77
    %p79 = scmp.ne.s32.totalorder %s70, %s71
    %p80 = scmp.eq.s32.totalorder %s18, 0
    %p81 = por %p79, %p80
    %p82 = scmp.ne.s32.totalorder %s70, %s71
    %p83 = scmp.eq.s32.totalorder %s19, 1
    %p84 = por %p82, %p83
    %p86 = scmp.ne.s32.totalorder %s71, %s85
    %p87 = scmp.eq.s32.totalorder %s19, 0
    %p88 = por %p86, %p87
    %s90 = sadd.s32 %s89, 1
    %p93 = scmp.eq.s32.totalorder %s13, 1
    %p94 = scmp.ne.s32.totalorder %s89, %s91
    %p95 = scmp.eq.s32.totalorder %s13, 0
    %p96 = por %p94, %p95
    %p97 = scmp.ne.s32.totalorder %s89, %s91
    %p98 = scmp.eq.s32.totalorder %s18, 1
    %p99 = por %p97, %p98
    %p100 = scmp.ne.s32.totalorder %s91, %s92
    %p101 = scmp.eq.s32.totalorder %s18, 0
    %p102 = por %p100, %p101
    %p103 = scmp.ne.s32.totalorder %s91, %s92
    %p104 = scmp.eq.s32.totalorder %s19, 1
    %p105 = por %p103, %p104
    %p107 = scmp.ne.s32.totalorder %s92, %s106
    %p108 = scmp.eq.s32.totalorder %s19, 0
    %p109 = por %p107, %p108
    %s111 = sadd.s32 %s110, 1
    %p114 = scmp.eq.s32.totalorder %s13, 1
    %p115 = scmp.ne.s32.totalorder %s110, %s112
    %p116 = scmp.eq.s32.totalorder %s13, 0
    %p117 = por %p115, %p116
    %p118 = scmp.ne.s32.totalorder %s110, %s112
    %p119 = scmp.eq.s32.totalorder %s18, 1
    %p120 = por %p118, %p119
    %p121 = scmp.ne.s32.totalorder %s112, %s113
    %p122 = scmp.eq.s32.totalorder %s18, 0
    %p123 = por %p121, %p122
    %p124 = scmp.ne.s32.totalorder %s112, %s113
    %p125 = scmp.eq.s32.totalorder %s19, 1
    %p126 = por %p124, %p125
    %p128 = scmp.ne.s32.totalorder %s113, %s127
    %p129 = scmp.eq.s32.totalorder %s19, 0
    %p130 = por %p128, %p129
    %s132 = sadd.s32 %s131, 1
    %p135 = scmp.eq.s32.totalorder %s13, 1
    %p136 = scmp.ne.s32.totalorder %s131, %s133
    %p137 = scmp.eq.s32.totalorder %s13, 0
    %p138 = por %p136, %p137
    %p139 = scmp.ne.s32.totalorder %s131, %s133
    %p140 = scmp.eq.s32.totalorder %s18, 1
    %p141 = por %p139, %p140
    %p142 = scmp.ne.s32.totalorder %s133, %s134
    %p143 = scmp.eq.s32.totalorder %s18, 0
    %p144 = por %p142, %p143
    %p145 = scmp.ne.s32.totalorder %s133, %s134
    %p146 = scmp.eq.s32.totalorder %s19, 1
    %p147 = por %p145, %p146
    %p149 = scmp.ne.s32.totalorder %s134, %s148
    %p150 = scmp.eq.s32.totalorder %s19, 0
    %p151 = por %p149, %p150
    %s153 = sadd.s32 %s152, 1
    %p156 = scmp.eq.s32.totalorder %s13, 1
    %p157 = scmp.ne.s32.totalorder %s152, %s154
    %p158 = scmp.eq.s32.totalorder %s13, 0
    %p159 = por %p157, %p158
    %p160 = scmp.ne.s32.totalorder %s152, %s154
    %p161 = scmp.eq.s32.totalorder %s18, 1
    %p162 = por %p160, %p161
    %p163 = scmp.ne.s32.totalorder %s154, %s155
    %p164 = scmp.eq.s32.totalorder %s18, 0
    %p165 = por %p163, %p164
    %p166 = scmp.ne.s32.totalorder %s154, %s155
    %p167 = scmp.eq.s32.totalorder %s19, 1
    %p168 = por %p166, %p167
    %p170 = scmp.ne.s32.totalorder %s155, %s169
    %p171 = scmp.eq.s32.totalorder %s19, 0
    %p172 = por %p170, %p171
    %s173 = ssub.s32 %s13, %s20
    %p174 = scmp.eq.s32.totalorder %s173, 0
    %s176 = sadd.s32 %s175, 1
    %s177 = scalar_select %p174, %s175, %s176
    %p180 = pneg %p174
    %p181 = scmp.eq.s32.totalorder %s13, 1
    %p182 = por %p180, %p181
    %p183 = scmp.ne.s32.totalorder %s175, %s178
    %p184 = scmp.eq.s32.totalorder %s13, 0
    %p185 = por %p183, %p184
    %p186 = scmp.ne.s32.totalorder %s175, %s178
    %p187 = scmp.eq.s32.totalorder %s18, 1
    %p188 = por %p186, %p187
    %p189 = scmp.ne.s32.totalorder %s178, %s179
    %p190 = scmp.eq.s32.totalorder %s18, 0
    %p191 = por %p189, %p190
    %p192 = scmp.ne.s32.totalorder %s178, %s179
    %p193 = scmp.eq.s32.totalorder %s19, 1
    %p194 = por %p192, %p193
    %p196 = scmp.ne.s32.totalorder %s179, %s195
    %p197 = scmp.eq.s32.totalorder %s19, 0
    %p198 = por %p196, %p197
    %p199 = scmp.le.s32.totalorder 1, %s13
    %p200 = scmp.lt.s32.totalorder %s13, 3
    %p201 = pnand %p199, %p200
    %p202 = pneg %p201
    // Predicated region
    $region9: #{tpu_custom_call.1} parent=5 // pred_check
      _
    $region10: #{tpu_custom_call.1} parent=5 // pred_check_branch
      %204 = sbr.rel (%p201) target = $region12
    $region11: #{tpu_custom_call.1} parent=5 // pred_region
      %s205 = ssub.s32 %s13, 1
      // Predicated region
      $region13: #{tpu_custom_call.1} parent=11 // pred_check
        %p206 = pneg %p60
      $region14: #{tpu_custom_call.1} parent=11 // pred_check_branch
        %208 = sbr.rel (%p206) target = $region16
      $region15: #{tpu_custom_call.1} parent=11 // pred_region
        _
      $region16: #{tpu_custom_call.1} parent=11 // pred_fallthru
        _
      // Predicated region
      $region17: #{tpu_custom_call.1} parent=11 // pred_check
        %p209 = pneg %p81
      $region18: #{tpu_custom_call.1} parent=11 // pred_check_branch
        %211 = sbr.rel (%p209) target = $region20
      $region19: #{tpu_custom_call.1} parent=11 // pred_region
        _
      $region20: #{tpu_custom_call.1} parent=11 // pred_fallthru
        _
      // Predicated region
      $region21: #{tpu_custom_call.1} parent=11 // pred_check
        %p212 = pneg %p102
      $region22: #{tpu_custom_call.1} parent=11 // pred_check_branch
        %214 = sbr.rel (%p212) target = $region24
      $region23: #{tpu_custom_call.1} parent=11 // pred_region
        _
      $region24: #{tpu_custom_call.1} parent=11 // pred_fallthru
        _
      // Predicated region
      $region25: #{tpu_custom_call.1} parent=11 // pred_check
        %p215 = pneg %p123
      $region26: #{tpu_custom_call.1} parent=11 // pred_check_branch
        %217 = sbr.rel (%p215) target = $region28
      $region27: #{tpu_custom_call.1} parent=11 // pred_region
        _
      $region28: #{tpu_custom_call.1} parent=11 // pred_fallthru
        _
      // Predicated region
      $region29: #{tpu_custom_call.1} parent=11 // pred_check
        %p218 = pneg %p144
      $region30: #{tpu_custom_call.1} parent=11 // pred_check_branch
        %220 = sbr.rel (%p218) target = $region32
      $region31: #{tpu_custom_call.1} parent=11 // pred_region
        _
      $region32: #{tpu_custom_call.1} parent=11 // pred_fallthru
        _
      // Predicated region
      $region33: #{tpu_custom_call.1} parent=11 // pred_check
        %p221 = pneg %p165
      $region34: #{tpu_custom_call.1} parent=11 // pred_check_branch
        %223 = sbr.rel (%p221) target = $region36
      $region35: #{tpu_custom_call.1} parent=11 // pred_region
        _
      $region36: #{tpu_custom_call.1} parent=11 // pred_fallthru
        _
    $region12: #{tpu_custom_call.1} parent=5 // pred_fallthru
      _
    %p224 = scmp.lt.s32.totalorder %s13, 2
    // Predicated region
    $region37: #{tpu_custom_call.1} parent=5 // pred_check
      %p225 = pneg %p224
    $region38: #{tpu_custom_call.1} parent=5 // pred_check_branch
      %227 = sbr.rel (%p225) target = $region40
    $region39: #{tpu_custom_call.1} parent=5 // pred_region
      // Predicated region
      $region41: #{tpu_custom_call.1} parent=39 // pred_check
        %p228 = pneg %p33
      $region42: #{tpu_custom_call.1} parent=39 // pred_check_branch
        %230 = sbr.rel (%p228) target = $region44
      $region43: #{tpu_custom_call.1} parent=39 // pred_region
        %p231 = scmp.lt.s32.totalorder %s13, 1
        %s232 = scalar_select %p231, %s13, 1
        %s233 = smul.addr %s232, 8
        %s234 = scalar_lea.vmem %s0, %s233
      $region44: #{tpu_custom_call.1} parent=39 // pred_fallthru
        _
    $region40: #{tpu_custom_call.1} parent=5 // pred_fallthru
      _
    %p235 = scmp.le.s32.totalorder 1, %s13
    %p236 = scmp.lt.s32.totalorder %s13, 3
    %p237 = pnand %p235, %p236
    %p238 = pneg %p237
    // Predicated region
    $region45: #{tpu_custom_call.1} parent=5 // pred_check
      _
    $region46: #{tpu_custom_call.1} parent=5 // pred_check_branch
      %240 = sbr.rel (%p237) target = $region48
    $region47: #{tpu_custom_call.1} parent=5 // pred_region
      %s241 = ssub.s32 %s13, 1
      %p242 = scmp.lt.s32.totalorder %s18, 1
      %s243 = scalar_select %p242, %s18, 1
      %s244 = smul.addr %s243, 8
      %s245 = scalar_lea.vmem %s0, %s244
      %p246 = pneg %p39
      %p247 = pneg %p36
      %p248 = pneg %p60
      %p249 = pneg %p57
      %p250 = pneg %p81
      %p251 = pneg %p78
      %p252 = pneg %p102
      %p253 = pneg %p99
      %p254 = pneg %p123
      %p255 = pneg %p120
      %p256 = pneg %p144
      %p257 = pneg %p141
      %p258 = pneg %p165
      %p259 = pneg %p162
      %p260 = pneg %p191
      %p261 = pneg %p188
      %p262 = scmp.lt.s32.totalorder %s18, 1
      %s263 = scalar_select %p262, %s18, 1
      %s264 = smul.addr %s263, 8
      %s265 = scalar_lea.vmem %s7, %s264
      %p266 = scmp.lt.s32.totalorder %s18, 1
      %s267 = scalar_select %p266, %s18, 1
      %s268 = smul.addr %s267, 8
      %s269 = scalar_lea.vmem %s0, %s268
      %p270 = scmp.lt.s32.totalorder %s18, 1
      %s271 = scalar_select %p270, %s18, 1
      %s272 = smul.addr %s271, 8
      %s273 = scalar_lea.vmem %s7, %s272
      %v274 = vld [vmem:[%s269] sm:$0xff]
      %v275 = vld [vmem:[%s1] sm:$0xf]
      %v276 = vld [vmem:[%s2] sm:$0x1]
      %v278 = vlaneseq
      %v279 = vshrl.u32 %v278, 7
      %v280 = vsub.s32 0, %v279
      %v281 = vrot.slane %v276, %v280
      %vm283 = vcmask 31744
      %v285 = vsel %vm283, %v274, 0
      %vm287 = vcmask 1043456
      %v289 = vsel %vm287, %v275, 0
      %291 = vmatprep.subr.mxu0 0.0
      %292 = vmatpush1.msra.mxu0 %v289
      %293 = vmatprep.subr.mxu0 0.0
      %294 = vmatpush1.msra.mxu0 0.0
      %295 = vmatprep.subr.mxu0 0.0
      %296 = vmatpush1.msra.mxu0 0.0
      %297 = vmatprep.subr.mxu0 0.0
      %298 = vmatpush1.msra.mxu0 0.0
      %299 = vmatprep.subr.mxu0 0.0
      %300 = vmatpush1.msra.mxu0 0.0
      %301 = vmatprep.subr.mxu0 0.0
      %302 = vmatpush1.msra.mxu0 0.0
      %303 = vmatprep.subr.mxu0 0.0
      %304 = vmatpush1.msra.mxu0 0.0
      %305 = vmatprep.subr.mxu0 0.0
      %306 = vmatpush1.msra.mxu0 0.0
      %307 = vmatprep.subr.mxu0 0.0
      %308 = vmatpush1.msra.mxu0 0.0
      %309 = vmatprep.subr.mxu0 0.0
      %310 = vmatpush1.msra.mxu0 0.0
      %311 = vmatprep.subr.mxu0 0.0
      %312 = vmatpush1.msra.mxu0 0.0
      %313 = vmatprep.subr.mxu0 0.0
      %314 = vmatpush1.msra.mxu0 0.0
      %315 = vmatprep.subr.mxu0 0.0
      %316 = vmatpush1.msra.mxu0 0.0
      %317 = vmatprep.subr.mxu0 0.0
      %318 = vmatpush1.msra.mxu0 0.0
      %319 = vmatprep.subr.mxu0 0.0
      %320 = vmatpush1.msra.mxu0 0.0
      %321 = vmatprep.subr.mxu0 0.0
      %322 = vmatpush1.msra.mxu0 0.0
      %323 = vmatprep.subr.mxu0 0.0
      %324 = vmatpush1.msra.mxu0 0.0
      %325 = vmatprep.subr.mxu0 0.0
      %326 = vmatpush1.msra.mxu0 0.0
      %327 = vmatprep.subr.mxu0 0.0
      %328 = vmatpush1.msra.mxu0 0.0
      %329 = vmatprep.subr.mxu0 0.0
      %330 = vmatpush1.msra.mxu0 0.0
      %331 = vmatprep.subr.mxu0 0.0
      %332 = vmatpush1.msra.mxu0 0.0
      %333 = vmatprep.subr.mxu0 0.0
      %334 = vmatpush1.msra.mxu0 0.0
      %335 = vmatprep.subr.mxu0 0.0
      %336 = vmatpush1.msra.mxu0 0.0
      %337 = vmatprep.subr.mxu0 0.0
      %338 = vmatpush1.msra.mxu0 0.0
      %339 = vmatprep.subr.mxu0 0.0
      %340 = vmatpush1.msra.mxu0 0.0
      %341 = vmatprep.subr.mxu0 0.0
      %342 = vmatpush1.msra.mxu0 0.0
      %343 = vmatprep.subr.mxu0 0.0
      %344 = vmatpush1.msra.mxu0 0.0
      %345 = vmatprep.subr.mxu0 0.0
      %346 = vmatpush1.msra.mxu0 0.0
      %347 = vmatprep.subr.mxu0 0.0
      %348 = vmatpush1.msra.mxu0 0.0
      %349 = vmatprep.subr.mxu0 0.0
      %350 = vmatpush1.msra.mxu0 0.0
      %351 = vmatprep.subr.mxu0 0.0
      %352 = vmatpush1.msra.mxu0 0.0
      %353 = vmatprep.subr.mxu0 0.0
      %354 = vmatpush1.msra.mxu0 0.0
      %355 = vmatprep.mubr.f32.mxu0 0.0
      %356 = vmatmul.mubr.f32.gmra.mrb[0].mxu0 %v285
      %v357 = vpop.f32.mrb[0].mxu0
      %v358 = vadd.f32 %v281, %v357
      %v359 = vpop.f32.mrb[0].mxu0
      %360 = vdwg.mxu0
      %v361 = vmax.f32 %v358, 0.0
      %v362 = vld [vmem:[%s3] sm:$0xff]
      %v363 = vld [vmem:[%s3 + $0x8] sm:$0xff]
      %v364 = vld [vmem:[%s3 + $0x10] sm:$0xff]
      %v365 = vld [vmem:[%s3 + $0x18] sm:$0xff]
      %v366 = vld [vmem:[%s4] sm:$0x1]
      %v368 = vlaneseq
      %v369 = vshrl.u32 %v368, 7
      %v370 = vsub.s32 0, %v369
      %v371 = vrot.slane %v366, %v370
      %vm373 = vcmask 261120
      %v375 = vsel %vm373, %v361, 0
      %377 = vmatprep.subr.mxu0 0.0
      %378 = vmatpush1.msra.mxu0 %v362
      %379 = vmatprep.subr.mxu0 0.0
      %380 = vmatpush1.msra.mxu0 %v363
      %381 = vmatprep.subr.mxu0 0.0
      %382 = vmatpush1.msra.mxu0 %v364
      %383 = vmatprep.subr.mxu0 0.0
      %384 = vmatpush1.msra.mxu0 %v365
      %385 = vmatprep.subr.mxu0 0.0
      %386 = vmatpush1.msra.mxu0 0.0
      %387 = vmatprep.subr.mxu0 0.0
      %388 = vmatpush1.msra.mxu0 0.0
      %389 = vmatprep.subr.mxu0 0.0
      %390 = vmatpush1.msra.mxu0 0.0
      %391 = vmatprep.subr.mxu0 0.0
      %392 = vmatpush1.msra.mxu0 0.0
      %393 = vmatprep.subr.mxu0 0.0
      %394 = vmatpush1.msra.mxu0 0.0
      %395 = vmatprep.subr.mxu0 0.0
      %396 = vmatpush1.msra.mxu0 0.0
      %397 = vmatprep.subr.mxu0 0.0
      %398 = vmatpush1.msra.mxu0 0.0
      %399 = vmatprep.subr.mxu0 0.0
      %400 = vmatpush1.msra.mxu0 0.0
      %401 = vmatprep.subr.mxu0 0.0
      %402 = vmatpush1.msra.mxu0 0.0
      %403 = vmatprep.subr.mxu0 0.0
      %404 = vmatpush1.msra.mxu0 0.0
      %405 = vmatprep.subr.mxu0 0.0
      %406 = vmatpush1.msra.mxu0 0.0
      %407 = vmatprep.subr.mxu0 0.0
      %408 = vmatpush1.msra.mxu0 0.0
      %409 = vmatprep.subr.mxu0 0.0
      %410 = vmatpush1.msra.mxu0 0.0
      %411 = vmatprep.subr.mxu0 0.0
      %412 = vmatpush1.msra.mxu0 0.0
      %413 = vmatprep.subr.mxu0 0.0
      %414 = vmatpush1.msra.mxu0 0.0
      %415 = vmatprep.subr.mxu0 0.0
      %416 = vmatpush1.msra.mxu0 0.0
      %417 = vmatprep.subr.mxu0 0.0
      %418 = vmatpush1.msra.mxu0 0.0
      %419 = vmatprep.subr.mxu0 0.0
      %420 = vmatpush1.msra.mxu0 0.0
      %421 = vmatprep.subr.mxu0 0.0
      %422 = vmatpush1.msra.mxu0 0.0
      %423 = vmatprep.subr.mxu0 0.0
      %424 = vmatpush1.msra.mxu0 0.0
      %425 = vmatprep.subr.mxu0 0.0
      %426 = vmatpush1.msra.mxu0 0.0
      %427 = vmatprep.subr.mxu0 0.0
      %428 = vmatpush1.msra.mxu0 0.0
      %429 = vmatprep.subr.mxu0 0.0
      %430 = vmatpush1.msra.mxu0 0.0
      %431 = vmatprep.subr.mxu0 0.0
      %432 = vmatpush1.msra.mxu0 0.0
      %433 = vmatprep.subr.mxu0 0.0
      %434 = vmatpush1.msra.mxu0 0.0
      %435 = vmatprep.subr.mxu0 0.0
      %436 = vmatpush1.msra.mxu0 0.0
      %437 = vmatprep.subr.mxu0 0.0
      %438 = vmatpush1.msra.mxu0 0.0
      %439 = vmatprep.subr.mxu0 0.0
      %440 = vmatpush1.msra.mxu0 0.0
      %441 = vmatprep.mubr.f32.mxu0 0.0
      %442 = vmatmul.mubr.f32.gmra.mrb[0].mxu0 %v375
      %v443 = vpop.f32.mrb[0].mxu0
      %v444 = vadd.f32 %v371, %v443
      %v445 = vpop.f32.mrb[0].mxu0
      %446 = vdwg.mxu0
      %v447 = vmax.f32 %v444, 0.0
      %v448 = vld [vmem:[%s5] sm:$0xff]
      %v449 = vld [vmem:[%s5 + $0x8] sm:$0xff]
      %v450 = vld [vmem:[%s5 + $0x10] sm:$0xff]
      %v451 = vld [vmem:[%s5 + $0x18] sm:$0xff]
      %v452 = vld [vmem:[%s6] sm:$0x1]
      %v454 = vlaneseq
      %v455 = vshrl.u32 %v454, 7
      %v456 = vsub.s32 0, %v455
      %v457 = vrot.slane %v452, %v456
      %v460 = vsel %vm373, %v447, 0
      %462 = vmatprep.subr.mxu0 0.0
      %463 = vmatpush1.msra.mxu0 %v448
      %464 = vmatprep.subr.mxu0 0.0
      %465 = vmatpush1.msra.mxu0 %v449
      %466 = vmatprep.subr.mxu0 0.0
      %467 = vmatpush1.msra.mxu0 %v450
      %468 = vmatprep.subr.mxu0 0.0
      %469 = vmatpush1.msra.mxu0 %v451
      %470 = vmatprep.subr.mxu0 0.0
      %471 = vmatpush1.msra.mxu0 0.0
      %472 = vmatprep.subr.mxu0 0.0
      %473 = vmatpush1.msra.mxu0 0.0
      %474 = vmatprep.subr.mxu0 0.0
      %475 = vmatpush1.msra.mxu0 0.0
      %476 = vmatprep.subr.mxu0 0.0
      %477 = vmatpush1.msra.mxu0 0.0
      %478 = vmatprep.subr.mxu0 0.0
      %479 = vmatpush1.msra.mxu0 0.0
      %480 = vmatprep.subr.mxu0 0.0
      %481 = vmatpush1.msra.mxu0 0.0
      %482 = vmatprep.subr.mxu0 0.0
      %483 = vmatpush1.msra.mxu0 0.0
      %484 = vmatprep.subr.mxu0 0.0
      %485 = vmatpush1.msra.mxu0 0.0
      %486 = vmatprep.subr.mxu0 0.0
      %487 = vmatpush1.msra.mxu0 0.0
      %488 = vmatprep.subr.mxu0 0.0
      %489 = vmatpush1.msra.mxu0 0.0
      %490 = vmatprep.subr.mxu0 0.0
      %491 = vmatpush1.msra.mxu0 0.0
      %492 = vmatprep.subr.mxu0 0.0
      %493 = vmatpush1.msra.mxu0 0.0
      %494 = vmatprep.subr.mxu0 0.0
      %495 = vmatpush1.msra.mxu0 0.0
      %496 = vmatprep.subr.mxu0 0.0
      %497 = vmatpush1.msra.mxu0 0.0
      %498 = vmatprep.subr.mxu0 0.0
      %499 = vmatpush1.msra.mxu0 0.0
      %500 = vmatprep.subr.mxu0 0.0
      %501 = vmatpush1.msra.mxu0 0.0
      %502 = vmatprep.subr.mxu0 0.0
      %503 = vmatpush1.msra.mxu0 0.0
      %504 = vmatprep.subr.mxu0 0.0
      %505 = vmatpush1.msra.mxu0 0.0
      %506 = vmatprep.subr.mxu0 0.0
      %507 = vmatpush1.msra.mxu0 0.0
      %508 = vmatprep.subr.mxu0 0.0
      %509 = vmatpush1.msra.mxu0 0.0
      %510 = vmatprep.subr.mxu0 0.0
      %511 = vmatpush1.msra.mxu0 0.0
      %512 = vmatprep.subr.mxu0 0.0
      %513 = vmatpush1.msra.mxu0 0.0
      %514 = vmatprep.subr.mxu0 0.0
      %515 = vmatpush1.msra.mxu0 0.0
      %516 = vmatprep.subr.mxu0 0.0
      %517 = vmatpush1.msra.mxu0 0.0
      %518 = vmatprep.subr.mxu0 0.0
      %519 = vmatpush1.msra.mxu0 0.0
      %520 = vmatprep.subr.mxu0 0.0
      %521 = vmatpush1.msra.mxu0 0.0
      %522 = vmatprep.subr.mxu0 0.0
      %523 = vmatpush1.msra.mxu0 0.0
      %524 = vmatprep.subr.mxu0 0.0
      %525 = vmatpush1.msra.mxu0 0.0
      %526 = vmatprep.mubr.f32.mxu0 0.0
      %527 = vmatmul.mubr.f32.gmra.mrb[0].mxu0 %v460
      %v528 = vpop.f32.mrb[0].mxu0
      %v529 = vadd.f32 %v457, %v528
      %v530 = vpop.f32.mrb[0].mxu0
      %531 = vdwg.mxu0
      %vm532 = vcmask 15360
      %533 = vst.msk [vmem:[%s273] sm:$0xff] %vm532, %v529
      %p534 = scmp.lt.s32.totalorder %s18, 1
      %s535 = scalar_select %p534, %s18, 1
      %s536 = smul.addr %s535, 8
      %s537 = scalar_lea.vmem %s7, %s536
      // Predicated region
      $region49: #{tpu_custom_call.1} parent=47 // pred_check
        %p538 = pneg %p188
      $region50: #{tpu_custom_call.1} parent=47 // pred_check_branch
        %540 = sbr.rel (%p538) target = $region52
      $region51: #{tpu_custom_call.1} parent=47 // pred_region
        _
      $region52: #{tpu_custom_call.1} parent=47 // pred_fallthru
        _
    $region48: #{tpu_custom_call.1} parent=5 // pred_fallthru
      _
    %p541 = scmp.le.s32.totalorder 2, %s13
    // Predicated region
    $region53: #{tpu_custom_call.1} parent=5 // pred_check
      %p542 = pneg %p541
    $region54: #{tpu_custom_call.1} parent=5 // pred_check_branch
      %544 = sbr.rel (%p542) target = $region56
    $region55: #{tpu_custom_call.1} parent=5 // pred_region
      %s545 = ssub.s32 %s13, 2
      // Predicated region
      $region57: #{tpu_custom_call.1} parent=55 // pred_check
        %p546 = pneg %p194
      $region58: #{tpu_custom_call.1} parent=55 // pred_check_branch
        %548 = sbr.rel (%p546) target = $region60
      $region59: #{tpu_custom_call.1} parent=55 // pred_region
        %p549 = scmp.lt.s32.totalorder %s19, 1
        %s550 = scalar_select %p549, %s19, 1
        %s551 = smul.addr %s550, 8
        %s552 = scalar_lea.vmem %s7, %s551
      $region60: #{tpu_custom_call.1} parent=55 // pred_fallthru
        _
    $region56: #{tpu_custom_call.1} parent=5 // pred_fallthru
      _
  $region6: #{tpu_custom_call.1} parent=0 // loop_footer
    %s17 = sadd.s32 1, %s13
  $region7: #{tpu_custom_call.1} parent=0 // loop_footer_branch
    %12 = sbr.rel target = $region3
  $region8: #{tpu_custom_call.1} parent=0 // loop_exit
    _

</llo_original>
